<compile_context>
chip_gen: v5e
topology: v5e:2x2
jax: 0.10.0
libtpu: 0.0.40
codegen_flags: <defaults>
</compile_context>

<pallas_src>
import math

import jax
import jax.numpy as jnp
from jax import lax
from jax.experimental import pallas as pl
from jax.experimental.pallas import tpu as pltpu


# Large finite negative value (instead of -inf): avoids exp(-inf - (-inf)) NaNs
# if the block-skip / tiling invariants ever change.
_MASK_VALUE = -0.7 * float(jnp.finfo(jnp.float32).max)


def _pick_tile(n, candidates):
    """Largest candidate tile that evenly divides n, else the full extent."""
    for c in candidates:
        if n % c == 0:
            return c
    return n


def _pick_tile_m(n, candidates):
    """Like _pick_tile, but prefer a tile giving >= 2 blocks (v7x: 2 TCs)."""
    divisors = [c for c in candidates if n % c == 0]
    if not divisors:
        return n
    for c in divisors:
        if n // c >= 2:
            return c
    return divisors[-1]


def _vmem_limit(block_bytes):
    """Scoped-VMEM limit from actual block sizes (+headroom), clamped to a
    range that is safe on v5e (16 MiB default) through v7x (64 MiB physical)."""
    est = int(block_bytes) + (8 << 20)
    return int(min(max(est, 32 << 20), 64 << 20))


# --------------------------------------------------------------------------
# Fused QKV projection: (M, D_in) @ (3, D_in, D_out) -> (3, M, D_out)
# --------------------------------------------------------------------------

def _qkv_proj_kernel(x_ref, w_ref, o_ref, acc_ref):
    k_ax = pl.program_id(2)

    @pl.when(k_ax == 0)
    def _init():
        acc_ref[...] = jnp.zeros_like(acc_ref)

    x = x_ref[...]                               # (tm, tk) in input dtype
    for j in range(3):                           # q, k, v share the x block
        acc_ref[j] += jnp.dot(x, w_ref[j], preferred_element_type=jnp.float32)

    @pl.when(k_ax == pl.num_programs(2) - 1)
    def _store():
        o_ref[...] = acc_ref[...].astype(o_ref.dtype)


def _qkv_projection(x2d, w_qkv):
    M, d_in = x2d.shape
    d_out = w_qkv.shape[2]

    tm = _pick_tile_m(M, (512, 256, 128))
    tn = _pick_tile(d_out, (512, 256, 128))
    tk = _pick_tile(d_in, (512, 256, 128))      # 256/512 feed the 256-wide MXU
    grid = (M // tm, d_out // tn, d_in // tk)

    itemsize = jnp.dtype(x2d.dtype).itemsize
    x_blk = tm * tk * itemsize
    w_blk = 3 * tk * tn * itemsize
    o_blk = 3 * tm * tn * itemsize
    acc_blk = 3 * tm * tn * 4
    vmem = _vmem_limit(2 * (x_blk + w_blk + o_blk) + acc_blk)

    return pl.pallas_call(
        _qkv_proj_kernel,
        out_shape=jax.ShapeDtypeStruct((3, M, d_out), x2d.dtype),
        grid_spec=pltpu.PrefetchScalarGridSpec(
            num_scalar_prefetch=0,
            grid=grid,
            in_specs=[
                pl.BlockSpec((tm, tk), lambda i, j, k: (i, k)),
                pl.BlockSpec((3, tk, tn), lambda i, j, k: (0, k, j)),
            ],
            out_specs=pl.BlockSpec((3, tm, tn), lambda i, j, k: (0, i, j)),
            scratch_shapes=[pltpu.VMEM((3, tm, tn), jnp.float32)],
        ),
        compiler_params=pltpu.CompilerParams(
            dimension_semantics=("parallel", "parallel", "arbitrary"),
            vmem_limit_bytes=vmem,
        ),
    )(x2d, w_qkv)


# --------------------------------------------------------------------------
# Flash-style causal attention (online softmax), reads the (3, B, T, D) slab
# --------------------------------------------------------------------------

def _flash_attn_kernel(q_ref, k_ref, v_ref, o_ref, m_sc, l_sc, acc_sc):
    qi = pl.program_id(1)
    ki = pl.program_id(2)

    @pl.when(ki == 0)
    def _init():
        m_sc[...] = jnp.full_like(m_sc, _MASK_VALUE)
        l_sc[...] = jnp.zeros_like(l_sc)
        acc_sc[...] = jnp.zeros_like(acc_sc)

    def _scores():
        # Contract on the feature dim directly (no k.T materialization).
        return lax.dot_general(
            q_ref[0, 0], k_ref[0, 0], (((1,), (1,)), ((), ())),
            preferred_element_type=jnp.float32)          # (tq, tk) f32

    def _online_update(s):
        v = v_ref[0, 0]
        m_prev = m_sc[...]
        m_new = jnp.maximum(m_prev, jnp.max(s, axis=-1, keepdims=True))
        alpha = jnp.exp(m_prev - m_new)
        p = jnp.exp(s - m_new)
        l_sc[...] = alpha * l_sc[...] + jnp.sum(p, axis=-1, keepdims=True)
        acc_sc[...] = alpha * acc_sc[...] + jnp.dot(
            p.astype(v.dtype), v, preferred_element_type=jnp.float32)
        m_sc[...] = m_new

    @pl.when(ki < qi)                    # strictly below the diagonal: no mask
    def _body_block():
        _online_update(_scores())

    @pl.when(ki == qi)                   # diagonal block: local causal mask
    def _diag_block():
        s = _scores()
        tq, tk = s.shape
        # tq == tk and ki*tk == qi*tq on the diagonal, so local indices suffice
        # (loop-invariant iotas, no per-step offsets).
        row = lax.broadcasted_iota(jnp.int32, (tq, tk), 0)
        col = lax.broadcasted_iota(jnp.int32, (tq, tk), 1)
        _online_update(jnp.where(col > row, _MASK_VALUE, s))

        # The diagonal block is the last one this q tile ever uses, so
        # normalize and write the output here; later (skipped) kv steps touch
        # nothing.  TODO(synk): attention-weight dropout (training mode) is
        # not implemented (eval / dropout=0 semantics).
        o_ref[0] = (acc_sc[...] * pl.reciprocal(l_sc[...], approx=True)
                    ).astype(o_ref.dtype)


def _flash_attention(qkv):
    _, B, T, D = qkv.shape
    tile = _pick_tile(T, (1024, 512, 256, 128))   # tq == tk by construction
    nq = nk = T // tile

    itemsize = jnp.dtype(qkv.dtype).itemsize
    io_blk = 4 * tile * D * itemsize              # q + k + v + out blocks
    scr_blk = (2 * tile + tile * D) * 4
    vmem = _vmem_limit(2 * io_blk + scr_blk)

    def q_map(b, qi, ki):
        return (0, b, qi, 0)

    # Clamp the kv block index: causally skipped blocks re-present the previous
    # block, so Pallas elides their HBM fetch entirely (valid because tq==tk).
    def k_map(b, qi, ki):
        return (1, b, jnp.minimum(ki, qi), 0)

    def v_map(b, qi, ki):
        return (2, b, jnp.minimum(ki, qi), 0)

    # NOTE(v5e): if profiling shows exposed K/V DMA, add
    # pipeline_mode=pl.Buffered(3) to the k/v specs; on v6e/v7x keep depth 2.
    return pl.pallas_call(
        _flash_attn_kernel,
        out_shape=jax.ShapeDtypeStruct((B, T, D), qkv.dtype),
        grid_spec=pltpu.PrefetchScalarGridSpec(
            num_scalar_prefetch=0,
            grid=(B, nq, nk),
            in_specs=[
                pl.BlockSpec((1, 1, tile, D), q_map),
                pl.BlockSpec((1, 1, tile, D), k_map),
                pl.BlockSpec((1, 1, tile, D), v_map),
            ],
            out_specs=pl.BlockSpec((1, tile, D), lambda b, qi, ki: (b, qi, 0)),
            scratch_shapes=[
                pltpu.VMEM((tile, 1), jnp.float32),   # m (running max)
                pltpu.VMEM((tile, 1), jnp.float32),   # l (running denom)
                pltpu.VMEM((tile, D), jnp.float32),   # acc (unnormalized out)
            ],
        ),
        compiler_params=pltpu.CompilerParams(
            dimension_semantics=("parallel", "parallel", "arbitrary"),
            vmem_limit_bytes=vmem,
        ),
    )(qkv, qkv, qkv)


# --------------------------------------------------------------------------
# Public wrappers + reference
# --------------------------------------------------------------------------

def prepare_qkv_weights(w_query, w_key, w_value):
    """Stack weights as (3, D_in, D_out) with 1/sqrt(D_out) folded into W_query.

    In a real model call this once (outside the per-token path)."""
    d_out = w_query.shape[1]
    scale = 1.0 / math.sqrt(d_out)
    return jnp.stack([w_query * scale, w_key, w_value], axis=0)


def causal_attention_fused(x, w_qkv):
    """x: (B, T, D_in); w_qkv: (3, D_in, D_out) from prepare_qkv_weights."""
    B, T, d_in = x.shape
    d_out = w_qkv.shape[2]
    w_qkv = w_qkv.astype(x.dtype)

    # Pad long, non-128-aligned sequences so the flash kernel never falls back
    # to a full (T, T) score tile.  Padded keys sit strictly above the causal
    # diagonal of every real query, so they are masked automatically.
    Tp = T
    if T > 128 and T % 128 != 0:
        Tp = ((T + 127) // 128) * 128
        x = jnp.pad(x, ((0, 0), (0, Tp - T), (0, 0)))

    qkv = _qkv_projection(x.reshape(B * Tp, d_in), w_qkv)   # (3, B*Tp, D_out)
    qkv = qkv.reshape(3, B, Tp, d_out)                      # free reshape
    out = _flash_attention(qkv)                             # (B, Tp, D_out)
    if Tp != T:
        out = out[:, :T]
    return out
    # NOTE: for best store/lane utilization, real configs should use
    # D_out % 128 == 0 (lane-dense output blocks).


def causal_attention(x, w_query, w_key, w_value):
    """x: (B, T, D_in); w_*: (D_in, D_out). Returns (B, T, D_out)."""
    return causal_attention_fused(x, prepare_qkv_weights(w_query, w_key, w_value))


def causal_attention_ref(x, w_query, w_key, w_value):
    """Plain-JAX reference matching the PyTorch forward (eval mode)."""
    q = x @ w_query
    k = x @ w_key
    v = x @ w_value
    scores = jnp.einsum("btd,bsd->bts", q, k)
    T = x.shape[1]
    mask = jnp.triu(jnp.ones((T, T), dtype=bool), k=1)
    scores = jnp.where(mask[None], -jnp.inf, scores)
    weights = jax.nn.softmax(scores / math.sqrt(k.shape[-1]), axis=-1)
    return weights @ v


if __name__ == "__main__":
    key = jax.random.PRNGKey(0)

    def _rand_weights(keys, d_in, d_out):
        bound = 1.0 / math.sqrt(d_in)
        return [jax.random.uniform(k, (d_in, d_out), jnp.float32, -bound, bound)
                for k in keys]

    # --- small config consistent with the module (batch=2, seq=8, dim=32) ---
    B, T, D_IN, D_OUT = 2, 8, 32, 32
    kx, kq, kk, kv = jax.random.split(key, 4)
    x = jax.random.normal(kx, (B, T, D_IN), dtype=jnp.float32)
    w_query, w_key, w_value = _rand_weights((kq, kk, kv), D_IN, D_OUT)

    out = jax.block_until_ready(causal_attention(x, w_query, w_key, w_value))
    ref = causal_attention_ref(x, w_query, w_key, w_value)
    assert out.shape == (B, T, D_OUT)
    assert jnp.allclose(out, ref, atol=2e-3, rtol=2e-3), "mismatch vs reference"

    # --- larger config: tiled projection (2 M-blocks) + single flash tile ---
    B2, T2, D2 = 2, 256, 64
    k2 = jax.random.split(jax.random.PRNGKey(0), 4)
    x2 = jax.random.normal(k2[0], (B2, T2, D2), dtype=jnp.float32)
    wq2, wk2, wv2 = _rand_weights(k2[1:], D2, D2)
    out2 = jax.block_until_ready(causal_attention(x2, wq2, wk2, wv2))
    ref2 = causal_attention_ref(x2, wq2, wk2, wv2)
    assert out2.shape == (B2, T2, D2)
    assert jnp.allclose(out2, ref2, atol=2e-3, rtol=2e-3), "mismatch (tiled path)"

    # --- non-128-aligned sequence: exercises the padding path ---
    B3, T3, D3 = 2, 200, 64
    k3 = jax.random.split(jax.random.PRNGKey(1), 4)
    x3 = jax.random.normal(k3[0], (B3, T3, D3), dtype=jnp.float32)
    wq3, wk3, wv3 = _rand_weights(k3[1:], D3, D3)
    out3 = jax.block_until_ready(causal_attention(x3, wq3, wk3, wv3))
    ref3 = causal_attention_ref(x3, wq3, wk3, wv3)
    assert out3.shape == (B3, T3, D3)
    assert jnp.allclose(out3, ref3, atol=2e-3, rtol=2e-3), "mismatch (padded path)"

    print("KERNEL_OK")
</pallas_src>

<mosaic_0001>
module attributes {stable_mosaic.version = 11 : i64} {
  func.func @_qkv_proj_kernel(%arg0: i32, %arg1: i32, %arg2: i32, %arg3: memref<16x32xf32, #tpu.memory_space<vmem>>, %arg4: memref<3x32x32xf32, #tpu.memory_space<vmem>>, %arg5: memref<3x16x32xf32, #tpu.memory_space<vmem>>, %arg6: memref<3x16x32xf32, #tpu.memory_space<vmem>>) attributes {dimension_semantics = [#tpu.dimension_semantics<parallel>, #tpu.dimension_semantics<parallel>, #tpu.dimension_semantics<arbitrary>], iteration_bounds = array<i64: 1, 1, 1>, scalar_prefetch = 0 : i64, scratch_operands = 1 : i64, tpu.core_type = #tpu.core_type<tc>, window_params = [{transform_indices = @transform_0, window_bounds = array<i64: 16, 32>}, {transform_indices = @transform_1, window_bounds = array<i64: 3, 32, 32>}, {transform_indices = @transform_2, window_bounds = array<i64: 3, 16, 32>}]} {
    %c0_i32 = arith.constant 0 : i32
    %0 = arith.cmpi eq, %arg2, %c0_i32 : i32
    %1 = arith.extui %0 : i1 to i32
    %c0_i32_0 = arith.constant 0 : i32
    %2 = arith.cmpi ne, %1, %c0_i32_0 : i32
    scf.if %2 {
      %cst_31 = arith.constant 0.000000e+00 : f32
      %34 = vector.broadcast %cst_31 : f32 to vector<3x16x32xf32>
      %c0_32 = arith.constant 0 : index
      %c0_33 = arith.constant 0 : index
      %c0_34 = arith.constant 0 : index
      %35 = vector.load %arg6[%c0_32, %c0_33, %c0_34] : memref<3x16x32xf32, #tpu.memory_space<vmem>>, vector<3x16x32xf32>
      tpu.vector_store %arg6[%c0_32, %c0_33, %c0_34], %34 {strides = array<i32>} : memref<3x16x32xf32, #tpu.memory_space<vmem>>, vector<3x16x32xf32>,
    } else {
    }
    %c0 = arith.constant 0 : index
    %c0_1 = arith.constant 0 : index
    %3 = vector.load %arg3[%c0, %c0_1] : memref<16x32xf32, #tpu.memory_space<vmem>>, vector<16x32xf32>
    %c0_2 = arith.constant 0 : index
    %c0_3 = arith.constant 0 : index
    %c0_4 = arith.constant 0 : index
    %4 = vector.load %arg6[%c0_2, %c0_3, %c0_4] : memref<3x16x32xf32, #tpu.memory_space<vmem>>, vector<1x16x32xf32>
    %5 = vector.shape_cast %4 : vector<1x16x32xf32> to vector<16x32xf32>
    %c0_5 = arith.constant 0 : index
    %c0_6 = arith.constant 0 : index
    %c0_7 = arith.constant 0 : index
    %6 = vector.load %arg4[%c0_5, %c0_6, %c0_7] : memref<3x32x32xf32, #tpu.memory_space<vmem>>, vector<1x32x32xf32>
    %7 = vector.shape_cast %6 : vector<1x32x32xf32> to vector<32x32xf32>
    %cst = arith.constant dense<0.000000e+00> : vector<16x32xf32>
    %8 = tpu.matmul %3, %7, %cst {dimension_numbers = #tpu.dot_dimension_numbers<[1], [0], [0], [1], [0, 0, 1, 1], [], []>} : vector<16x32xf32>, vector<32x32xf32>, vector<16x32xf32> -> vector<16x32xf32>
    %9 = arith.addf %5, %8 : vector<16x32xf32>
    %c0_8 = arith.constant 0 : index
    %c0_9 = arith.constant 0 : index
    %c0_10 = arith.constant 0 : index
    %10 = vector.load %arg6[%c0_8, %c0_9, %c0_10] : memref<3x16x32xf32, #tpu.memory_space<vmem>>, vector<1x16x32xf32>
    %11 = vector.shape_cast %10 : vector<1x16x32xf32> to vector<16x32xf32>
    %12 = vector.shape_cast %9 : vector<16x32xf32> to vector<1x16x32xf32>
    tpu.vector_store %arg6[%c0_8, %c0_9, %c0_10], %12 {strides = array<i32>} : memref<3x16x32xf32, #tpu.memory_space<vmem>>, vector<1x16x32xf32>,
    %c1 = arith.constant 1 : index
    %c0_11 = arith.constant 0 : index
    %c0_12 = arith.constant 0 : index
    %13 = vector.load %arg6[%c1, %c0_11, %c0_12] : memref<3x16x32xf32, #tpu.memory_space<vmem>>, vector<1x16x32xf32>
    %14 = vector.shape_cast %13 : vector<1x16x32xf32> to vector<16x32xf32>
    %c1_13 = arith.constant 1 : index
    %c0_14 = arith.constant 0 : index
    %c0_15 = arith.constant 0 : index
    %15 = vector.load %arg4[%c1_13, %c0_14, %c0_15] : memref<3x32x32xf32, #tpu.memory_space<vmem>>, vector<1x32x32xf32>
    %16 = vector.shape_cast %15 : vector<1x32x32xf32> to vector<32x32xf32>
    %cst_16 = arith.constant dense<0.000000e+00> : vector<16x32xf32>
    %17 = tpu.matmul %3, %16, %cst_16 {dimension_numbers = #tpu.dot_dimension_numbers<[1], [0], [0], [1], [0, 0, 1, 1], [], []>} : vector<16x32xf32>, vector<32x32xf32>, vector<16x32xf32> -> vector<16x32xf32>
    %18 = arith.addf %14, %17 : vector<16x32xf32>
    %c1_17 = arith.constant 1 : index
    %c0_18 = arith.constant 0 : index
    %c0_19 = arith.constant 0 : index
    %19 = vector.load %arg6[%c1_17, %c0_18, %c0_19] : memref<3x16x32xf32, #tpu.memory_space<vmem>>, vector<1x16x32xf32>
    %20 = vector.shape_cast %19 : vector<1x16x32xf32> to vector<16x32xf32>
    %21 = vector.shape_cast %18 : vector<16x32xf32> to vector<1x16x32xf32>
    tpu.vector_store %arg6[%c1_17, %c0_18, %c0_19], %21 {strides = array<i32>} : memref<3x16x32xf32, #tpu.memory_space<vmem>>, vector<1x16x32xf32>,
    %c2 = arith.constant 2 : index
    %c0_20 = arith.constant 0 : index
    %c0_21 = arith.constant 0 : index
    %22 = vector.load %arg6[%c2, %c0_20, %c0_21] : memref<3x16x32xf32, #tpu.memory_space<vmem>>, vector<1x16x32xf32>
    %23 = vector.shape_cast %22 : vector<1x16x32xf32> to vector<16x32xf32>
    %c2_22 = arith.constant 2 : index
    %c0_23 = arith.constant 0 : index
    %c0_24 = arith.constant 0 : index
    %24 = vector.load %arg4[%c2_22, %c0_23, %c0_24] : memref<3x32x32xf32, #tpu.memory_space<vmem>>, vector<1x32x32xf32>
    %25 = vector.shape_cast %24 : vector<1x32x32xf32> to vector<32x32xf32>
    %cst_25 = arith.constant dense<0.000000e+00> : vector<16x32xf32>
    %26 = tpu.matmul %3, %25, %cst_25 {dimension_numbers = #tpu.dot_dimension_numbers<[1], [0], [0], [1], [0, 0, 1, 1], [], []>} : vector<16x32xf32>, vector<32x32xf32>, vector<16x32xf32> -> vector<16x32xf32>
    %27 = arith.addf %23, %26 : vector<16x32xf32>
    %c2_26 = arith.constant 2 : index
    %c0_27 = arith.constant 0 : index
    %c0_28 = arith.constant 0 : index
    %28 = vector.load %arg6[%c2_26, %c0_27, %c0_28] : memref<3x16x32xf32, #tpu.memory_space<vmem>>, vector<1x16x32xf32>
    %29 = vector.shape_cast %28 : vector<1x16x32xf32> to vector<16x32xf32>
    %30 = vector.shape_cast %27 : vector<16x32xf32> to vector<1x16x32xf32>
    tpu.vector_store %arg6[%c2_26, %c0_27, %c0_28], %30 {strides = array<i32>} : memref<3x16x32xf32, #tpu.memory_space<vmem>>, vector<1x16x32xf32>,
    %c0_i32_29 = arith.constant 0 : i32
    %31 = arith.cmpi eq, %arg2, %c0_i32_29 : i32
    %32 = arith.extui %31 : i1 to i32
    %c0_i32_30 = arith.constant 0 : i32
    %33 = arith.cmpi ne, %32, %c0_i32_30 : i32
    scf.if %33 {
      %c0_31 = arith.constant 0 : index
      %c0_32 = arith.constant 0 : index
      %c0_33 = arith.constant 0 : index
      %34 = vector.load %arg6[%c0_31, %c0_32, %c0_33] : memref<3x16x32xf32, #tpu.memory_space<vmem>>, vector<3x16x32xf32>
      %c0_34 = arith.constant 0 : index
      %c0_35 = arith.constant 0 : index
      %c0_36 = arith.constant 0 : index
      %35 = vector.load %arg5[%c0_34, %c0_35, %c0_36] : memref<3x16x32xf32, #tpu.memory_space<vmem>>, vector<3x16x32xf32>
      tpu.vector_store %arg5[%c0_34, %c0_35, %c0_36], %34 {strides = array<i32>} : memref<3x16x32xf32, #tpu.memory_space<vmem>>, vector<3x16x32xf32>,
    } else {
    }
    return
  }
  func.func @transform_0(%arg0: i32, %arg1: i32, %arg2: i32) -> (i32, i32) {
    %c0_i32 = arith.constant 0 : i32
    return %arg0, %arg2 : i32, i32
  }
  func.func @transform_1(%arg0: i32, %arg1: i32, %arg2: i32) -> (i32, i32, i32) {
    %c0_i32 = arith.constant 0 : i32
    %c0_i32_0 = arith.constant 0 : i32
    return %c0_i32, %arg2, %arg1 : i32, i32, i32
  }
  func.func @transform_2(%arg0: i32, %arg1: i32, %arg2: i32) -> (i32, i32, i32) {
    %c0_i32 = arith.constant 0 : i32
    %c0_i32_0 = arith.constant 0 : i32
    return %c0_i32, %arg0, %arg1 : i32, i32, i32
  }
}

</mosaic_0001>

<llo_original>
// kernel: tpu_custom_call.1
$region0: #{tpu_custom_call.1}
  #allocation0 [shape = 'u32[]', space=smem, size = 0x4, offset = 0x4, fixed_abs, tag = 'smem constant byte address 0x4 - core index']
  #allocation1 [shape = 'u32[72,128]{1,0:T(1,128)}', space=vmem, size = 0x9000, scoped, tag = 'internal scratch']
  #allocation2 [shape = 'f32[3,16,32]{2,1,0:T(8,128)}', space=vmem, size = 0x6000, scoped, tag = 'scratch operand']
  %s0 = inlined_call_operand.hbm [shape: f32[16,32], index: 0, kind: input, shape index: {}]
  %s1 = inlined_call_operand.hbm [shape: f32[3,32,32], index: 1, kind: input, shape index: {}]
  %s2 = inlined_call_operand.hbm [shape: f32[3,16,32], index: 2, kind: output, shape index: {}]
  %s3 = sld [smem:[#allocation0]]
  $region34: #{tpu_custom_call.1} parent=0
    _
  %s5 = ssub.s32 1, %s3
  %s6 = scalar_select 0, %s5, %s3
  $region1: #{tpu_custom_call.1} parent=0
    #allocation3 [shape = 'u8[8192]{0}', space=vmem, size = 0x2000, scoped, tag = 'input window, operand 0, single buffered']
    #allocation4 [shape = 's32[1]{0}', space=sflag, size = 0x4, scoped, tag = 'scoped memory for tpu_custom_call.1']
    #allocation5 [shape = 's32[1]{0}', space=sflag, size = 0x4, scoped, tag = 'scoped memory for tpu_custom_call.1']
    #allocation6 [shape = 'u8[49152]{0}', space=vmem, size = 0xc000, scoped, tag = 'input window, operand 1, single buffered']
    #allocation7 [shape = 's32[1]{0}', space=sflag, size = 0x4, scoped, tag = 'scoped memory for tpu_custom_call.1']
    #allocation8 [shape = 'u8[24576]{0}', space=vmem, size = 0x6000, scoped, tag = 'output window, operand 0, single buffered']
    %7 = vsyncpa [#allocation4], 0
    %8 = vsyncpa [#allocation7], 0
    %9 = vsyncpa [#allocation5], 0
    // Predicated region
    $region2: #{tpu_custom_call.1} parent=1 // pred_check
      _
    $region3: #{tpu_custom_call.1} parent=1 // pred_check_branch
      %11 = sbr.rel (0) target = $region5
    $region4: #{tpu_custom_call.1} parent=1 // pred_region
      %13 = vsyncadd [#allocation4], 0
      %s14 = sshll.u32 %s0, 4
      %s15 = int_to_ptr.hbm [resolvable:$true] %s14
      %s16 = sshll.u32 [#allocation3], 4
      %s17 = int_to_ptr.vmem [resolvable:$true] %s16
      %22 = dma.hbm_to_vmem [thread:$0]  %s15, 256, %s17, [#allocation4], 128, 128, 8
    $region5: #{tpu_custom_call.1} parent=1 // pred_fallthru
      _
    // Predicated region
    $region6: #{tpu_custom_call.1} parent=1 // pred_check
      _
    $region7: #{tpu_custom_call.1} parent=1 // pred_check_branch
      %24 = sbr.rel (0) target = $region9
    $region8: #{tpu_custom_call.1} parent=1 // pred_region
      %26 = vsyncadd [#allocation7], 0
      %s27 = sshll.u32 %s1, 4
      %s28 = int_to_ptr.hbm [resolvable:$true] %s27
      %s29 = sshll.u32 [#allocation6], 4
      %s30 = int_to_ptr.vmem [resolvable:$true] %s29
      %35 = dma.hbm_to_vmem [thread:$0]  %s28, 1536, %s30, [#allocation7], 128, 128, 8
    $region9: #{tpu_custom_call.1} parent=1 // pred_fallthru
      _
    // Predicated region
    $region10: #{tpu_custom_call.1} parent=1 // pred_check
      _
    $region11: #{tpu_custom_call.1} parent=1 // pred_check_branch
      %37 = sbr.rel (0) target = $region13
    $region12: #{tpu_custom_call.1} parent=1 // pred_region
      %39 = dma.done [#allocation4], 256
    $region13: #{tpu_custom_call.1} parent=1 // pred_fallthru
      _
    // Predicated region
    $region14: #{tpu_custom_call.1} parent=1 // pred_check
      _
    $region15: #{tpu_custom_call.1} parent=1 // pred_check_branch
      %41 = sbr.rel (0) target = $region17
    $region16: #{tpu_custom_call.1} parent=1 // pred_region
      %43 = dma.done [#allocation7], 1536
    $region17: #{tpu_custom_call.1} parent=1 // pred_fallthru
      _
    %p44 = scmp.eq.s32.totalorder 0, 0
    // Predicated region
    $region18: #{tpu_custom_call.1} parent=1 // pred_check
      %p45 = pneg %p44
    $region19: #{tpu_custom_call.1} parent=1 // pred_check_branch
      %47 = sbr.rel (%p45) target = $region21
    $region20: #{tpu_custom_call.1} parent=1 // pred_region
      %vm48 = vcmask 261120
      %49 = vst.msk [vmem:[#allocation2] sm:$0xff] %vm48, 0.0
      %50 = vst.msk [vmem:[#allocation2 + $0x8] sm:$0xff] %vm48, 0.0
      %51 = vst.msk [vmem:[#allocation2 + $0x10] sm:$0xff] %vm48, 0.0
      %52 = vst.msk [vmem:[#allocation2 + $0x18] sm:$0xff] %vm48, 0.0
      %53 = vst.msk [vmem:[#allocation2 + $0x20] sm:$0xff] %vm48, 0.0
      %54 = vst.msk [vmem:[#allocation2 + $0x28] sm:$0xff] %vm48, 0.0
    $region21: #{tpu_custom_call.1} parent=1 // pred_fallthru
      _
    %v55 = vld [vmem:[#allocation3] sm:$0xff]
    %v56 = vld [vmem:[#allocation3 + $0x8] sm:$0xff]
    %v57 = vld [vmem:[#allocation2] sm:$0xff]
    %v58 = vld [vmem:[#allocation2 + $0x8] sm:$0xff]
    %v59 = vld [vmem:[#allocation6] sm:$0xff]
    %v60 = vld [vmem:[#allocation6 + $0x8] sm:$0xff]
    %v61 = vld [vmem:[#allocation6 + $0x10] sm:$0xff]
    %v62 = vld [vmem:[#allocation6 + $0x18] sm:$0xff]
    %vm63 = vcmask 261120
    %v65 = vsel %vm63, %v55, 0
    %v68 = vsel %vm63, %v56, 0
    %70 = vmatpush.msra.mxu0 0.0
    %71 = vmatpush.msra.mxu0 0.0
    %72 = vmatpush.msra.mxu0 0.0
    %73 = vmatpush.msra.mxu0 0.0
    %74 = vmatpush.msra.mxu0 0.0
    %75 = vmatpush.msra.mxu0 0.0
    %76 = vmatpush.msra.mxu0 0.0
    %77 = vmatpush.msra.mxu0 0.0
    %78 = vmatpush.msra.mxu0 0.0
    %79 = vmatpush.msra.mxu0 0.0
    %80 = vmatpush.msra.mxu0 0.0
    %81 = vmatpush.msra.mxu0 0.0
    %82 = vmatpush.msra.mxu0 %v62
    %83 = vmatpush.msra.mxu0 %v61
    %84 = vmatpush.msra.mxu0 %v60
    %85 = vmatpush.msra.mxu0 %v59
    %86 = vmatmul.f32.gmra.mxu0 %v65
    %v87 = vpop.f32.mrf.mxu0
    %v88 = vadd.f32 0.0, %v87
    %89 = vmatmul.f32.gmra.mxu0 %v68
    %v90 = vpop.f32.mrf.mxu0
    %v91 = vadd.f32 0.0, %v90
    %92 = vdwg.mxu0
    %v93 = vadd.f32 %v57, %v88
    %v94 = vadd.f32 %v58, %v91
    %95 = vst.msk [vmem:[#allocation2] sm:$0xff] %vm63, %v93
    %96 = vst.msk [vmem:[#allocation2 + $0x8] sm:$0xff] %vm63, %v94
    %s97 = scalar_lea.vmem [#allocation2], 16
    %v98 = vld [vmem:[%s97] sm:$0xff]
    %v99 = vld [vmem:[%s97 + $0x8] sm:$0xff]
    %s100 = scalar_lea.vmem [#allocation6], 32
    %v101 = vld [vmem:[%s100] sm:$0xff]
    %v102 = vld [vmem:[%s100 + $0x8] sm:$0xff]
    %v103 = vld [vmem:[%s100 + $0x10] sm:$0xff]
    %v104 = vld [vmem:[%s100 + $0x18] sm:$0xff]
    %105 = vmatpush.msra.mxu0 0.0
    %106 = vmatpush.msra.mxu0 0.0
    %107 = vmatpush.msra.mxu0 0.0
    %108 = vmatpush.msra.mxu0 0.0
    %109 = vmatpush.msra.mxu0 0.0
    %110 = vmatpush.msra.mxu0 0.0
    %111 = vmatpush.msra.mxu0 0.0
    %112 = vmatpush.msra.mxu0 0.0
    %113 = vmatpush.msra.mxu0 0.0
    %114 = vmatpush.msra.mxu0 0.0
    %115 = vmatpush.msra.mxu0 0.0
    %116 = vmatpush.msra.mxu0 0.0
    %117 = vmatpush.msra.mxu0 %v104
    %118 = vmatpush.msra.mxu0 %v103
    %119 = vmatpush.msra.mxu0 %v102
    %120 = vmatpush.msra.mxu0 %v101
    %121 = vmatmul.f32.gmra.mxu0 %v65
    %v122 = vpop.f32.mrf.mxu0
    %v123 = vadd.f32 0.0, %v122
    %124 = vmatmul.f32.gmra.mxu0 %v68
    %v125 = vpop.f32.mrf.mxu0
    %v126 = vadd.f32 0.0, %v125
    %127 = vdwg.mxu0
    %v128 = vadd.f32 %v98, %v123
    %v129 = vadd.f32 %v99, %v126
    %130 = vst.msk [vmem:[%s97] sm:$0xff] %vm63, %v128
    %131 = vst.msk [vmem:[%s97 + $0x8] sm:$0xff] %vm63, %v129
    %s132 = scalar_lea.vmem [#allocation2], 32
    %v133 = vld [vmem:[%s132] sm:$0xff]
    %v134 = vld [vmem:[%s132 + $0x8] sm:$0xff]
    %s135 = scalar_lea.vmem [#allocation6], 64
    %v136 = vld [vmem:[%s135] sm:$0xff]
    %v137 = vld [vmem:[%s135 + $0x8] sm:$0xff]
    %v138 = vld [vmem:[%s135 + $0x10] sm:$0xff]
    %v139 = vld [vmem:[%s135 + $0x18] sm:$0xff]
    %140 = vmatpush.msra.mxu0 0.0
    %141 = vmatpush.msra.mxu0 0.0
    %142 = vmatpush.msra.mxu0 0.0
    %143 = vmatpush.msra.mxu0 0.0
    %144 = vmatpush.msra.mxu0 0.0
    %145 = vmatpush.msra.mxu0 0.0
    %146 = vmatpush.msra.mxu0 0.0
    %147 = vmatpush.msra.mxu0 0.0
    %148 = vmatpush.msra.mxu0 0.0
    %149 = vmatpush.msra.mxu0 0.0
    %150 = vmatpush.msra.mxu0 0.0
    %151 = vmatpush.msra.mxu0 0.0
    %152 = vmatpush.msra.mxu0 %v139
    %153 = vmatpush.msra.mxu0 %v138
    %154 = vmatpush.msra.mxu0 %v137
    %155 = vmatpush.msra.mxu0 %v136
    %156 = vmatmul.f32.gmra.mxu0 %v65
    %v157 = vpop.f32.mrf.mxu0
    %v158 = vadd.f32 0.0, %v157
    %159 = vmatmul.f32.gmra.mxu0 %v68
    %v160 = vpop.f32.mrf.mxu0
    %v161 = vadd.f32 0.0, %v160
    %162 = vdwg.mxu0
    %v163 = vadd.f32 %v133, %v158
    %v164 = vadd.f32 %v134, %v161
    %165 = vst.msk [vmem:[%s132] sm:$0xff] %vm63, %v163
    %166 = vst.msk [vmem:[%s132 + $0x8] sm:$0xff] %vm63, %v164
    // Predicated region
    $region22: #{tpu_custom_call.1} parent=1 // pred_check
      %p167 = pneg %p44
    $region23: #{tpu_custom_call.1} parent=1 // pred_check_branch
      %169 = sbr.rel (%p167) target = $region25
    $region24: #{tpu_custom_call.1} parent=1 // pred_region
      %v170 = vld [vmem:[#allocation2] sm:$0xff]
      %v171 = vld [vmem:[#allocation2 + $0x8] sm:$0xff]
      %v172 = vld [vmem:[#allocation2 + $0x10] sm:$0xff]
      %v173 = vld [vmem:[#allocation2 + $0x18] sm:$0xff]
      %v174 = vld [vmem:[#allocation2 + $0x20] sm:$0xff]
      %v175 = vld [vmem:[#allocation2 + $0x28] sm:$0xff]
      %176 = vst.msk [vmem:[#allocation8] sm:$0xff] %vm63, %v170
      %177 = vst.msk [vmem:[#allocation8 + $0x8] sm:$0xff] %vm63, %v171
      %178 = vst.msk [vmem:[#allocation8 + $0x10] sm:$0xff] %vm63, %v172
      %179 = vst.msk [vmem:[#allocation8 + $0x18] sm:$0xff] %vm63, %v173
      %180 = vst.msk [vmem:[#allocation8 + $0x20] sm:$0xff] %vm63, %v174
      %181 = vst.msk [vmem:[#allocation8 + $0x28] sm:$0xff] %vm63, %v175
    $region25: #{tpu_custom_call.1} parent=1 // pred_fallthru
      _
    // Predicated region
    $region26: #{tpu_custom_call.1} parent=1 // pred_check
      _
    $region27: #{tpu_custom_call.1} parent=1 // pred_check_branch
      %183 = sbr.rel (0) target = $region29
    $region28: #{tpu_custom_call.1} parent=1 // pred_region
      %185 = vsyncadd [#allocation5], 0
      %s186 = sshll.u32 [#allocation8], 4
      %s187 = int_to_ptr.vmem [resolvable:$true] %s186
      %s188 = sshll.u32 %s2, 4
      %s189 = int_to_ptr.hbm [resolvable:$true] %s188
      %194 = dma.vmem_to_hbm [thread:$0]  %s187, 768, %s189, [#allocation5], 128, 128, 8
    $region29: #{tpu_custom_call.1} parent=1 // pred_fallthru
      _
    // Predicated region
    $region30: #{tpu_custom_call.1} parent=1 // pred_check
      _
    $region31: #{tpu_custom_call.1} parent=1 // pred_check_branch
      %196 = sbr.rel (0) target = $region33
    $region32: #{tpu_custom_call.1} parent=1 // pred_region
      %198 = dma.done [#allocation5], 768
    $region33: #{tpu_custom_call.1} parent=1 // pred_fallthru
      _
    %199 = vsyncpa [#allocation4], 1
    %200 = vsyncpa [#allocation7], 1
    %201 = vsyncpa [#allocation5], 1

</llo_original>
